<compile_context>
chip_gen: v7x
topology: tpu7x:2x2x1
jax: 0.10.0
libtpu: 0.0.40
codegen_flags: <defaults>
</compile_context>

<pallas_src>
import jax
import jax.numpy as jnp
from jax import lax
from jax.experimental import pallas as pl
from jax.experimental.pallas import tpu as pltpu

CONV_IN_CHANNELS = 252          # fixed by the module definition
NEG_LARGE = -1e30               # padding value for vocab columns (acts as -inf)


# ---------------------------------------------------------------------------
# Kernel 1: conv-reduce + tiled GEMM + online logsumexp statistics
# ---------------------------------------------------------------------------
def _gemm_logsumexp_kernel(x_ref, cw_ref, wp_ref, bias_ref,   # inputs
                           z_ref, logz_ref,                   # outputs
                           y_sc, m_sc, l_sc):                 # VMEM scratch
    # x_ref:    (TB, C, D) f32  -- same block across the V axis (DMA'd once/M-tile)
    # cw_ref:   (1, C, 1)  f32  -- Conv1d(252,1,1) weight
    # wp_ref:   (TV, D)    bf16 -- proj weight tile, PyTorch (vocab, d_model) layout
    # bias_ref: (1, TV)    f32  -- folded bias (padded vocab columns = NEG_LARGE)
    # z_ref:    (TB, TV)   f32  -- unnormalized logits tile
    # logz_ref: (TB, 1)    f32  -- log-partition per row (written at last V step)
    # y_sc:     (TB, D)    f32  -- conv-reduced activations, cached across V tiles
    # m_sc/l_sc:(TB, 1)    f32  -- running max / running sum(exp)
    v = pl.program_id(1)

    @pl.when(v == 0)
    def _init():
        # Conv1d(252, 1, kernel_size=1) == weighted sum over the channel axis.
        y_sc[...] = jnp.sum(x_ref[...] * cw_ref[...], axis=1)          # (TB, D) f32
        m_sc[...] = jnp.full_like(m_sc, NEG_LARGE)
        l_sc[...] = jnp.zeros_like(l_sc)

    # (TB, D) @ (TV, D)^T on the MXU: bf16 inputs, f32 accumulation.
    y16 = y_sc[...].astype(jnp.bfloat16)
    z = lax.dot_general(y16, wp_ref[...],
                        dimension_numbers=(((1,), (1,)), ((), ())),
                        preferred_element_type=jnp.float32)            # (TB, TV)
    z = z + bias_ref[...]
    z_ref[...] = z

    # Online (flash-style) logsumexp across V tiles.
    m_prev = m_sc[...]
    m_new = jnp.maximum(m_prev, jnp.max(z, axis=-1, keepdims=True))
    alpha = jnp.exp(m_prev - m_new)
    l_sc[...] = alpha * l_sc[...] + jnp.sum(jnp.exp(z - m_new), axis=-1, keepdims=True)
    m_sc[...] = m_new

    @pl.when(v == pl.num_programs(1) - 1)
    def _finalize():
        logz_ref[...] = m_sc[...] + jnp.log(l_sc[...])


# ---------------------------------------------------------------------------
# Kernel 2: normalize  (out = z - logZ), elementwise over (TB, TV) tiles
# ---------------------------------------------------------------------------
def _normalize_kernel(z_ref, logz_ref, o_ref):
    o_ref[...] = z_ref[...] - logz_ref[...]


# ---------------------------------------------------------------------------
# Wrapper
# ---------------------------------------------------------------------------
def _pick_vocab_tile(v_padded, target=2048):
    """Largest multiple of 128 that divides v_padded and is <= target."""
    best = 128
    for cand in range(128, min(v_padded, target) + 1, 128):
        if v_padded % cand == 0:
            best = cand
    return best


def _pick_batch_tile(b, target=64):
    """Batch tile: full batch if small, else a multiple-of-8 divisor."""
    if b <= target:
        return b
    best = b
    for cand in range(8, target + 1, 8):
        if b % cand == 0:
            best = cand
    return best


def generator_forward(x, w_proj, b_proj, w_conv, b_conv):
    """x: (B, 252, d_model) f32; weights in PyTorch layout. Returns (B, vocab) f32."""
    B, C, D = x.shape
    assert C == CONV_IN_CHANNELS
    V = w_proj.shape[0]                       # PyTorch Linear weight is (vocab, d_model)

    # Fold biases:  conv(proj(x)) = (cw @ x) @ Wp^T + (sum(cw) * b_proj + b_conv)
    cw_vec = w_conv.reshape(-1).astype(jnp.float32)                    # (C,)
    bias_eff = jnp.sum(cw_vec) * b_proj.astype(jnp.float32) + b_conv.astype(jnp.float32)

    # Pad vocab to a multiple of 128 lanes; padded columns get NEG_LARGE bias
    # so they never influence max / logsumexp.
    Vp = ((V + 127) // 128) * 128
    pad_v = Vp - V
    wp = w_proj.astype(jnp.bfloat16)                                   # (V, D) -> bf16
    if pad_v:
        wp = jnp.pad(wp, ((0, pad_v), (0, 0)))
        bias_eff = jnp.pad(bias_eff, (0, pad_v), constant_values=NEG_LARGE)
    bias_eff = bias_eff.reshape(1, Vp)
    cw3 = cw_vec.reshape(1, C, 1)

    TV = _pick_vocab_tile(Vp)
    TB = _pick_batch_tile(B)
    grid = (B // TB, Vp // TV)

    x = x.astype(jnp.float32)
    cparams = pltpu.CompilerParams(
        dimension_semantics=("parallel", "arbitrary"),
        vmem_limit_bytes=48 * 1024 * 1024,
    )

    z, logz = pl.pallas_call(
        _gemm_logsumexp_kernel,
        out_shape=(jax.ShapeDtypeStruct((B, Vp), jnp.float32),
                   jax.ShapeDtypeStruct((B, 1), jnp.float32)),
        grid_spec=pltpu.PrefetchScalarGridSpec(
            num_scalar_prefetch=0,
            grid=grid,
            in_specs=[
                pl.BlockSpec((TB, C, D), lambda m, v: (m, 0, 0)),   # x (resident over V)
                pl.BlockSpec((1, C, 1), lambda m, v: (0, 0, 0)),    # conv weight
                pl.BlockSpec((TV, D), lambda m, v: (v, 0)),         # proj weight tile
                pl.BlockSpec((1, TV), lambda m, v: (0, v)),         # folded bias tile
            ],
            out_specs=(
                pl.BlockSpec((TB, TV), lambda m, v: (m, v)),        # unnormalized logits
                pl.BlockSpec((TB, 1), lambda m, v: (m, 0)),         # logZ per row
            ),
            scratch_shapes=[
                pltpu.VMEM((TB, D), jnp.float32),                   # y = cw @ x
                pltpu.VMEM((TB, 1), jnp.float32),                   # running max
                pltpu.VMEM((TB, 1), jnp.float32),                   # running sum(exp)
            ],
        ),
        compiler_params=cparams,
    )(x, cw3, wp, bias_eff)

    out = pl.pallas_call(
        _normalize_kernel,
        out_shape=jax.ShapeDtypeStruct((B, Vp), jnp.float32),
        grid_spec=pltpu.PrefetchScalarGridSpec(
            num_scalar_prefetch=0,
            grid=grid,
            in_specs=[
                pl.BlockSpec((TB, TV), lambda m, v: (m, v)),
                pl.BlockSpec((TB, 1), lambda m, v: (m, 0)),
            ],
            out_specs=pl.BlockSpec((TB, TV), lambda m, v: (m, v)),
        ),
        compiler_params=pltpu.CompilerParams(
            dimension_semantics=("parallel", "parallel"),
            vmem_limit_bytes=48 * 1024 * 1024,
        ),
        input_output_aliases={0: 0},     # normalize z in place (no extra HBM slab)
    )(z, logz)

    return out[:, :V] if pad_v else out


# ---------------------------------------------------------------------------
# Pure-JAX reference mirroring the PyTorch forward exactly
# ---------------------------------------------------------------------------
def reference_forward(x, w_proj, b_proj, w_conv, b_conv):
    h = jnp.einsum("bcd,vd->bcv", x, w_proj) + b_proj            # proj
    z = jnp.einsum("bcv,c->bv", h, w_conv.reshape(-1)) + b_conv  # conv1d, k=1
    return jax.nn.log_softmax(z, axis=-1)                        # squeeze(1) implicit


if __name__ == "__main__":
    key = jax.random.PRNGKey(0)
    C = CONV_IN_CHANNELS

    def run_case(B, d_model, vocab):
        k = jax.random.fold_in(key, vocab)
        k_x, k_wp, k_bp, k_cw, k_cb = jax.random.split(k, 5)
        lim_p = 1.0 / jnp.sqrt(d_model)
        lim_c = 1.0 / jnp.sqrt(C)
        x = jax.random.normal(k_x, (B, C, d_model), dtype=jnp.float32)
        w_proj = jax.random.uniform(k_wp, (vocab, d_model), jnp.float32, -lim_p, lim_p)
        b_proj = jax.random.uniform(k_bp, (vocab,), jnp.float32, -lim_p, lim_p)
        w_conv = jax.random.uniform(k_cw, (1, C, 1), jnp.float32, -lim_c, lim_c)
        b_conv = jax.random.uniform(k_cb, (1,), jnp.float32, -lim_c, lim_c)

        out = jax.block_until_ready(generator_forward(x, w_proj, b_proj, w_conv, b_conv))
        ref = reference_forward(x, w_proj, b_proj, w_conv, b_conv)
        assert out.shape == (B, vocab), f"bad shape {out.shape}"
        # bf16 MXU inputs with f32 accumulation -> slightly looser tolerance vs f32 ref
        assert jnp.allclose(out, ref, atol=2e-2, rtol=0.0), f"mismatch vs reference (V={vocab})"

    run_case(B=2, d_model=32, vocab=128)   # basic case
    run_case(B=2, d_model=32, vocab=200)   # exercises vocab padding / tiling path
    print("KERNEL_OK")
</pallas_src>

<mosaic_0001>
module attributes {stable_mosaic.version = 11 : i64} {
  func.func @_gemm_logsumexp_kernel(%arg0: i32, %arg1: i32, %arg2: memref<2x252x32xf32, #tpu.memory_space<vmem>>, %arg3: memref<1x252x1xf32, #tpu.memory_space<vmem>>, %arg4: memref<128x32xbf16, #tpu.memory_space<vmem>>, %arg5: memref<1x128xf32, #tpu.memory_space<vmem>>, %arg6: memref<2x128xf32, #tpu.memory_space<vmem>>, %arg7: memref<2x1xf32, #tpu.memory_space<vmem>>, %arg8: memref<2x32xf32, #tpu.memory_space<vmem>>, %arg9: memref<2x1xf32, #tpu.memory_space<vmem>>, %arg10: memref<2x1xf32, #tpu.memory_space<vmem>>) attributes {dimension_semantics = [#tpu.dimension_semantics<parallel>, #tpu.dimension_semantics<arbitrary>], iteration_bounds = array<i64: 1, 1>, scalar_prefetch = 0 : i64, scratch_operands = 3 : i64, tpu.core_type = #tpu.core_type<tc>, window_params = [{transform_indices = @transform_0, window_bounds = array<i64: 2, 252, 32>}, {pipeline_mode = #tpu.pipeline_mode<synchronous>, transform_indices = @transform_1, window_bounds = array<i64: 1, 252, 1>}, {transform_indices = @transform_2, window_bounds = array<i64: 128, 32>}, {transform_indices = @transform_3, window_bounds = array<i64: 1, 128>}, {transform_indices = @transform_4, window_bounds = array<i64: 2, 128>}, {transform_indices = @transform_5, window_bounds = array<i64: 2, 1>}]} {
    %c0_i32 = arith.constant 0 : i32
    %0 = arith.cmpi eq, %arg1, %c0_i32 : i32
    %1 = arith.extui %0 : i1 to i32
    %c0_i32_0 = arith.constant 0 : i32
    %2 = arith.cmpi ne, %1, %c0_i32_0 : i32
    scf.if %2 {
      %c0_20 = arith.constant 0 : index
      %c0_21 = arith.constant 0 : index
      %c0_22 = arith.constant 0 : index
      %30 = vector.load %arg2[%c0_20, %c0_21, %c0_22] : memref<2x252x32xf32, #tpu.memory_space<vmem>>, vector<2x252x32xf32>
      %c0_23 = arith.constant 0 : index
      %c0_24 = arith.constant 0 : index
      %c0_25 = arith.constant 0 : index
      %31 = vector.load %arg3[%c0_23, %c0_24, %c0_25] : memref<1x252x1xf32, #tpu.memory_space<vmem>>, vector<1x252x1xf32>
      %32 = vector.broadcast %31 : vector<1x252x1xf32> to vector<2x252x32xf32>
      %33 = arith.mulf %30, %32 : vector<2x252x32xf32>
      %cst_26 = arith.constant dense<0.000000e+00> : vector<2x32xf32>
      %34 = vector.multi_reduction <add>, %33, %cst_26 [1] : vector<2x252x32xf32> to vector<2x32xf32>
      %c0_27 = arith.constant 0 : index
      %c0_28 = arith.constant 0 : index
      %35 = vector.load %arg8[%c0_27, %c0_28] : memref<2x32xf32, #tpu.memory_space<vmem>>, vector<2x32xf32>
      tpu.vector_store %arg8[%c0_27, %c0_28], %34 {strides = array<i32>} : memref<2x32xf32, #tpu.memory_space<vmem>>, vector<2x32xf32>,
      %cst_29 = arith.constant -1.000000e+30 : f32
      %36 = vector.broadcast %cst_29 : f32 to vector<2x1xf32>
      %c0_30 = arith.constant 0 : index
      %c0_31 = arith.constant 0 : index
      %37 = vector.load %arg9[%c0_30, %c0_31] : memref<2x1xf32, #tpu.memory_space<vmem>>, vector<2x1xf32>
      tpu.vector_store %arg9[%c0_30, %c0_31], %36 {strides = array<i32>} : memref<2x1xf32, #tpu.memory_space<vmem>>, vector<2x1xf32>,
      %cst_32 = arith.constant 0.000000e+00 : f32
      %38 = vector.broadcast %cst_32 : f32 to vector<2x1xf32>
      %c0_33 = arith.constant 0 : index
      %c0_34 = arith.constant 0 : index
      %39 = vector.load %arg10[%c0_33, %c0_34] : memref<2x1xf32, #tpu.memory_space<vmem>>, vector<2x1xf32>
      tpu.vector_store %arg10[%c0_33, %c0_34], %38 {strides = array<i32>} : memref<2x1xf32, #tpu.memory_space<vmem>>, vector<2x1xf32>,
    } else {
    }
    %c0 = arith.constant 0 : index
    %c0_1 = arith.constant 0 : index
    %3 = vector.load %arg8[%c0, %c0_1] : memref<2x32xf32, #tpu.memory_space<vmem>>, vector<2x32xf32>
    %4 = arith.truncf %3 : vector<2x32xf32> to vector<2x32xbf16>
    %c0_2 = arith.constant 0 : index
    %c0_3 = arith.constant 0 : index
    %5 = vector.load %arg4[%c0_2, %c0_3] : memref<128x32xbf16, #tpu.memory_space<vmem>>, vector<128x32xbf16>
    %cst = arith.constant dense<0.000000e+00> : vector<2x128xf32>
    %6 = tpu.matmul %4, %5, %cst {dimension_numbers = #tpu.dot_dimension_numbers<[1], [1], [0], [0], [0, 0, 1, 0], [], []>} : vector<2x32xbf16>, vector<128x32xbf16>, vector<2x128xf32> -> vector<2x128xf32>
    %c0_4 = arith.constant 0 : index
    %c0_5 = arith.constant 0 : index
    %7 = vector.load %arg5[%c0_4, %c0_5] : memref<1x128xf32, #tpu.memory_space<vmem>>, vector<1x128xf32>
    %8 = vector.broadcast %7 : vector<1x128xf32> to vector<2x128xf32>
    %9 = arith.addf %6, %8 : vector<2x128xf32>
    %c0_6 = arith.constant 0 : index
    %c0_7 = arith.constant 0 : index
    %10 = vector.load %arg6[%c0_6, %c0_7] : memref<2x128xf32, #tpu.memory_space<vmem>>, vector<2x128xf32>
    tpu.vector_store %arg6[%c0_6, %c0_7], %9 {strides = array<i32>} : memref<2x128xf32, #tpu.memory_space<vmem>>, vector<2x128xf32>,
    %c0_8 = arith.constant 0 : index
    %c0_9 = arith.constant 0 : index
    %11 = vector.load %arg9[%c0_8, %c0_9] : memref<2x1xf32, #tpu.memory_space<vmem>>, vector<2x1xf32>
    %cst_10 = arith.constant dense<0xFF800000> : vector<2xf32>
    %12 = vector.multi_reduction <maximumf>, %9, %cst_10 [1] : vector<2x128xf32> to vector<2xf32>
    %13 = vector.shape_cast %12 : vector<2xf32> to vector<2x1xf32>
    %14 = arith.maximumf %11, %13 : vector<2x1xf32>
    %15 = arith.subf %11, %14 : vector<2x1xf32>
    %16 = math.exp %15 : vector<2x1xf32>
    %c0_11 = arith.constant 0 : index
    %c0_12 = arith.constant 0 : index
    %17 = vector.load %arg10[%c0_11, %c0_12] : memref<2x1xf32, #tpu.memory_space<vmem>>, vector<2x1xf32>
    %18 = arith.mulf %16, %17 : vector<2x1xf32>
    %19 = vector.broadcast %14 : vector<2x1xf32> to vector<2x128xf32>
    %20 = arith.subf %9, %19 : vector<2x128xf32>
    %21 = math.exp %20 : vector<2x128xf32>
    %cst_13 = arith.constant dense<0.000000e+00> : vector<2xf32>
    %22 = vector.multi_reduction <add>, %21, %cst_13 [1] : vector<2x128xf32> to vector<2xf32>
    %23 = vector.shape_cast %22 : vector<2xf32> to vector<2x1xf32>
    %24 = arith.addf %18, %23 : vector<2x1xf32>
    %c0_14 = arith.constant 0 : index
    %c0_15 = arith.constant 0 : index
    %25 = vector.load %arg10[%c0_14, %c0_15] : memref<2x1xf32, #tpu.memory_space<vmem>>, vector<2x1xf32>
    tpu.vector_store %arg10[%c0_14, %c0_15], %24 {strides = array<i32>} : memref<2x1xf32, #tpu.memory_space<vmem>>, vector<2x1xf32>,
    %c0_16 = arith.constant 0 : index
    %c0_17 = arith.constant 0 : index
    %26 = vector.load %arg9[%c0_16, %c0_17] : memref<2x1xf32, #tpu.memory_space<vmem>>, vector<2x1xf32>
    tpu.vector_store %arg9[%c0_16, %c0_17], %14 {strides = array<i32>} : memref<2x1xf32, #tpu.memory_space<vmem>>, vector<2x1xf32>,
    %c0_i32_18 = arith.constant 0 : i32
    %27 = arith.cmpi eq, %arg1, %c0_i32_18 : i32
    %28 = arith.extui %27 : i1 to i32
    %c0_i32_19 = arith.constant 0 : i32
    %29 = arith.cmpi ne, %28, %c0_i32_19 : i32
    scf.if %29 {
      %c0_20 = arith.constant 0 : index
      %c0_21 = arith.constant 0 : index
      %30 = vector.load %arg9[%c0_20, %c0_21] : memref<2x1xf32, #tpu.memory_space<vmem>>, vector<2x1xf32>
      %c0_22 = arith.constant 0 : index
      %c0_23 = arith.constant 0 : index
      %31 = vector.load %arg10[%c0_22, %c0_23] : memref<2x1xf32, #tpu.memory_space<vmem>>, vector<2x1xf32>
      %32 = math.log %31 : vector<2x1xf32>
      %33 = arith.addf %30, %32 : vector<2x1xf32>
      %c0_24 = arith.constant 0 : index
      %c0_25 = arith.constant 0 : index
      %34 = vector.load %arg7[%c0_24, %c0_25] : memref<2x1xf32, #tpu.memory_space<vmem>>, vector<2x1xf32>
      tpu.vector_store %arg7[%c0_24, %c0_25], %33 {strides = array<i32>} : memref<2x1xf32, #tpu.memory_space<vmem>>, vector<2x1xf32>,
    } else {
    }
    return
  }
  func.func @transform_0(%arg0: i32, %arg1: i32) -> (i32, i32, i32) {
    %c0_i32 = arith.constant 0 : i32
    %c0_i32_0 = arith.constant 0 : i32
    %c0_i32_1 = arith.constant 0 : i32
    return %arg0, %c0_i32, %c0_i32_0 : i32, i32, i32
  }
  func.func @transform_1(%arg0: i32, %arg1: i32) -> (i32, i32, i32) {
    %c0_i32 = arith.constant 0 : i32
    %c0_i32_0 = arith.constant 0 : i32
    %c0_i32_1 = arith.constant 0 : i32
    %c0_i32_2 = arith.constant 0 : i32
    return %c0_i32, %c0_i32_0, %c0_i32_1 : i32, i32, i32
  }
  func.func @transform_2(%arg0: i32, %arg1: i32) -> (i32, i32) {
    %c0_i32 = arith.constant 0 : i32
    %c0_i32_0 = arith.constant 0 : i32
    return %arg1, %c0_i32 : i32, i32
  }
  func.func @transform_3(%arg0: i32, %arg1: i32) -> (i32, i32) {
    %c0_i32 = arith.constant 0 : i32
    %c0_i32_0 = arith.constant 0 : i32
    return %c0_i32, %arg1 : i32, i32
  }
  func.func @transform_4(%arg0: i32, %arg1: i32) -> (i32, i32) {
    %c0_i32 = arith.constant 0 : i32
    return %arg0, %arg1 : i32, i32
  }
  func.func @transform_5(%arg0: i32, %arg1: i32) -> (i32, i32) {
    %c0_i32 = arith.constant 0 : i32
    %c0_i32_0 = arith.constant 0 : i32
    return %arg0, %c0_i32 : i32, i32
  }
}

</mosaic_0001>

<llo_original>
// kernel: tpu_custom_call.1
$region0: #{tpu_custom_call.1}
  #allocation0 [shape = 'u32[]', space=smem, size = 0x4, offset = 0x4, fixed_abs, tag = 'smem constant byte address 0x4 - core index']
  #allocation1 [shape = 'u32[144,128]{1,0:T(1,128)}', space=vmem, size = 0x12000, scoped, tag = 'internal scratch']
  #allocation2 [shape = 'f32[2,32]{1,0:T(2,128)}', space=vmem, size = 0x400, scoped, tag = 'scratch operand']
  #allocation3 [shape = 'f32[2,1]{1,0:T(2,128)}', space=vmem, size = 0x400, scoped, tag = 'scratch operand']
  #allocation4 [shape = 'f32[2,1]{1,0:T(2,128)}', space=vmem, size = 0x400, scoped, tag = 'scratch operand']
  %s0 = inlined_call_operand.vmem [shape: f32[2,252,32], index: 0, kind: input, shape index: {}]
  %s1 = inlined_call_operand.vmem [shape: f32[1,252,1], index: 1, kind: input, shape index: {}]
  %s2 = inlined_call_operand.vmem [shape: bf16[128,32], index: 2, kind: input, shape index: {}]
  %s3 = inlined_call_operand.vmem [shape: f32[1,128], index: 3, kind: input, shape index: {}]
  %s4 = inlined_call_operand.hbm [shape: f32[2,128], index: 4, kind: output, shape index: {0}]
  %s5 = inlined_call_operand.vmem [shape: f32[2,1], index: 5, kind: output, shape index: {1}]
  %6 = xla_tuple %s4, %s5
  %s7 = sld [smem:[#allocation0]]
  $region42: #{tpu_custom_call.1} parent=0
    _
  %s9 = ssub.s32 1, %s7
  %s10 = scalar_select 0, %s9, %s7
  $region1: #{tpu_custom_call.1} parent=0
    #allocation5 [shape = 'u8[1024]{0}', space=vmem, size = 0x400, scoped, tag = 'output window, operand 0, single buffered']
    #allocation6 [shape = 's32[1]{0}', space=sflag, size = 0x4, scoped, tag = 'scoped memory for tpu_custom_call.1']
    %11 = vsyncpa [#allocation6], 0
    // Predicated region
    $region2: #{tpu_custom_call.1} parent=1 // pred_check
      _
    $region3: #{tpu_custom_call.1} parent=1 // pred_check_branch
      %13 = sbr.rel (0) target = $region5
    $region4: #{tpu_custom_call.1} parent=1 // pred_region
      _
    $region5: #{tpu_custom_call.1} parent=1 // pred_fallthru
      _
    // Predicated region
    $region6: #{tpu_custom_call.1} parent=1 // pred_check
      _
    $region7: #{tpu_custom_call.1} parent=1 // pred_check_branch
      %15 = sbr.rel (0) target = $region9
    $region8: #{tpu_custom_call.1} parent=1 // pred_region
      _
    $region9: #{tpu_custom_call.1} parent=1 // pred_fallthru
      _
    // Predicated region
    $region10: #{tpu_custom_call.1} parent=1 // pred_check
      _
    $region11: #{tpu_custom_call.1} parent=1 // pred_check_branch
      %17 = sbr.rel (0) target = $region13
    $region12: #{tpu_custom_call.1} parent=1 // pred_region
      _
    $region13: #{tpu_custom_call.1} parent=1 // pred_fallthru
      _
    // Predicated region
    $region14: #{tpu_custom_call.1} parent=1 // pred_check
      _
    $region15: #{tpu_custom_call.1} parent=1 // pred_check_branch
      %19 = sbr.rel (0) target = $region17
    $region16: #{tpu_custom_call.1} parent=1 // pred_region
      _
    $region17: #{tpu_custom_call.1} parent=1 // pred_fallthru
      _
    %p21 = scmp.eq.s32.totalorder 0, 0
    // Predicated region
    $region18: #{tpu_custom_call.1} parent=1 // pred_check
      %p22 = pneg %p21
    $region19: #{tpu_custom_call.1} parent=1 // pred_check_branch
      %24 = sbr.rel (%p22) target = $region21
    $region20: #{tpu_custom_call.1} parent=1 // pred_region
      %v25 = vld [vmem:[%s0] sm:$0xff]
      %v26 = vld [vmem:[%s0 + $0x8] sm:$0xff]
      %v27 = vld [vmem:[%s0 + $0x10] sm:$0xff]
      %v28 = vld [vmem:[%s0 + $0x18] sm:$0xff]
      %v29 = vld [vmem:[%s0 + $0x20] sm:$0xff]
      %v30 = vld [vmem:[%s0 + $0x28] sm:$0xff]
      %v31 = vld [vmem:[%s0 + $0x30] sm:$0xff]
      %v32 = vld [vmem:[%s0 + $0x38] sm:$0xff]
      %v33 = vld [vmem:[%s0 + $0x40] sm:$0xff]
      %v34 = vld [vmem:[%s0 + $0x48] sm:$0xff]
      %v35 = vld [vmem:[%s0 + $0x50] sm:$0xff]
      %v36 = vld [vmem:[%s0 + $0x58] sm:$0xff]
      %v37 = vld [vmem:[%s0 + $0x60] sm:$0xff]
      %v38 = vld [vmem:[%s0 + $0x68] sm:$0xff]
      %v39 = vld [vmem:[%s0 + $0x70] sm:$0xff]
      %v40 = vld [vmem:[%s0 + $0x78] sm:$0xff]
      %v41 = vld [vmem:[%s0 + $0x80] sm:$0xff]
      %v42 = vld [vmem:[%s0 + $0x88] sm:$0xff]
      %v43 = vld [vmem:[%s0 + $0x90] sm:$0xff]
      %v44 = vld [vmem:[%s0 + $0x98] sm:$0xff]
      %v45 = vld [vmem:[%s0 + $0xa0] sm:$0xff]
      %v46 = vld [vmem:[%s0 + $0xa8] sm:$0xff]
      %v47 = vld [vmem:[%s0 + $0xb0] sm:$0xff]
      %v48 = vld [vmem:[%s0 + $0xb8] sm:$0xff]
      %v49 = vld [vmem:[%s0 + $0xc0] sm:$0xff]
      %v50 = vld [vmem:[%s0 + $0xc8] sm:$0xff]
      %v51 = vld [vmem:[%s0 + $0xd0] sm:$0xff]
      %v52 = vld [vmem:[%s0 + $0xd8] sm:$0xff]
      %v53 = vld [vmem:[%s0 + $0xe0] sm:$0xff]
      %v54 = vld [vmem:[%s0 + $0xe8] sm:$0xff]
      %v55 = vld [vmem:[%s0 + $0xf0] sm:$0xff]
      %v56 = vld [vmem:[%s0 + $0xf8] sm:$0xf]
      %v57 = vld [vmem:[%s0 + $0x100] sm:$0xff]
      %v58 = vld [vmem:[%s0 + $0x108] sm:$0xff]
      %v59 = vld [vmem:[%s0 + $0x110] sm:$0xff]
      %v60 = vld [vmem:[%s0 + $0x118] sm:$0xff]
      %v61 = vld [vmem:[%s0 + $0x120] sm:$0xff]
      %v62 = vld [vmem:[%s0 + $0x128] sm:$0xff]
      %v63 = vld [vmem:[%s0 + $0x130] sm:$0xff]
      %v64 = vld [vmem:[%s0 + $0x138] sm:$0xff]
      %v65 = vld [vmem:[%s0 + $0x140] sm:$0xff]
      %v66 = vld [vmem:[%s0 + $0x148] sm:$0xff]
      %v67 = vld [vmem:[%s0 + $0x150] sm:$0xff]
      %v68 = vld [vmem:[%s0 + $0x158] sm:$0xff]
      %v69 = vld [vmem:[%s0 + $0x160] sm:$0xff]
      %v70 = vld [vmem:[%s0 + $0x168] sm:$0xff]
      %v71 = vld [vmem:[%s0 + $0x170] sm:$0xff]
      %v72 = vld [vmem:[%s0 + $0x178] sm:$0xff]
      %v73 = vld [vmem:[%s0 + $0x180] sm:$0xff]
      %v74 = vld [vmem:[%s0 + $0x188] sm:$0xff]
      %v75 = vld [vmem:[%s0 + $0x190] sm:$0xff]
      %v76 = vld [vmem:[%s0 + $0x198] sm:$0xff]
      %v77 = vld [vmem:[%s0 + $0x1a0] sm:$0xff]
      %v78 = vld [vmem:[%s0 + $0x1a8] sm:$0xff]
      %v79 = vld [vmem:[%s0 + $0x1b0] sm:$0xff]
      %v80 = vld [vmem:[%s0 + $0x1b8] sm:$0xff]
      %v81 = vld [vmem:[%s0 + $0x1c0] sm:$0xff]
      %v82 = vld [vmem:[%s0 + $0x1c8] sm:$0xff]
      %v83 = vld [vmem:[%s0 + $0x1d0] sm:$0xff]
      %v84 = vld [vmem:[%s0 + $0x1d8] sm:$0xff]
      %v85 = vld [vmem:[%s0 + $0x1e0] sm:$0xff]
      %v86 = vld [vmem:[%s0 + $0x1e8] sm:$0xff]
      %v87 = vld [vmem:[%s0 + $0x1f0] sm:$0xff]
      %v88 = vld [vmem:[%s0 + $0x1f8] sm:$0xf]
      %v89 = vld [vmem:[%s1] sm:$0xff]
      %v90 = vld [vmem:[%s1 + $0x8] sm:$0xff]
      %v91 = vld [vmem:[%s1 + $0x10] sm:$0xff]
      %v92 = vld [vmem:[%s1 + $0x18] sm:$0xff]
      %v93 = vld [vmem:[%s1 + $0x20] sm:$0xff]
      %v94 = vld [vmem:[%s1 + $0x28] sm:$0xff]
      %v95 = vld [vmem:[%s1 + $0x30] sm:$0xff]
      %v96 = vld [vmem:[%s1 + $0x38] sm:$0xff]
      %v97 = vld [vmem:[%s1 + $0x40] sm:$0xff]
      %v98 = vld [vmem:[%s1 + $0x48] sm:$0xff]
      %v99 = vld [vmem:[%s1 + $0x50] sm:$0xff]
      %v100 = vld [vmem:[%s1 + $0x58] sm:$0xff]
      %v101 = vld [vmem:[%s1 + $0x60] sm:$0xff]
      %v102 = vld [vmem:[%s1 + $0x68] sm:$0xff]
      %v103 = vld [vmem:[%s1 + $0x70] sm:$0xff]
      %v104 = vld [vmem:[%s1 + $0x78] sm:$0xff]
      %v105 = vld [vmem:[%s1 + $0x80] sm:$0xff]
      %v106 = vld [vmem:[%s1 + $0x88] sm:$0xff]
      %v107 = vld [vmem:[%s1 + $0x90] sm:$0xff]
      %v108 = vld [vmem:[%s1 + $0x98] sm:$0xff]
      %v109 = vld [vmem:[%s1 + $0xa0] sm:$0xff]
      %v110 = vld [vmem:[%s1 + $0xa8] sm:$0xff]
      %v111 = vld [vmem:[%s1 + $0xb0] sm:$0xff]
      %v112 = vld [vmem:[%s1 + $0xb8] sm:$0xff]
      %v113 = vld [vmem:[%s1 + $0xc0] sm:$0xff]
      %v114 = vld [vmem:[%s1 + $0xc8] sm:$0xff]
      %v115 = vld [vmem:[%s1 + $0xd0] sm:$0xff]
      %v116 = vld [vmem:[%s1 + $0xd8] sm:$0xff]
      %v117 = vld [vmem:[%s1 + $0xe0] sm:$0xff]
      %v118 = vld [vmem:[%s1 + $0xe8] sm:$0xff]
      %v119 = vld [vmem:[%s1 + $0xf0] sm:$0xff]
      %v120 = vld [vmem:[%s1 + $0xf8] sm:$0xf]
      %122 = vset.pattern.permute.xlu0 0
      %123 = vperm.xlu0 %122, %v89
      %v124 = vpop.permute.xlu0 %123
      %127 = vset.pattern.permute.xlu0 0
      %128 = vperm.xlu0 %127, %v90
      %v129 = vpop.permute.xlu0 %128
      %132 = vset.pattern.permute.xlu0 0
      %133 = vperm.xlu0 %132, %v91
      %v134 = vpop.permute.xlu0 %133
      %137 = vset.pattern.permute.xlu0 0
      %138 = vperm.xlu0 %137, %v92
      %v139 = vpop.permute.xlu0 %138
      %142 = vset.pattern.permute.xlu0 0
      %143 = vperm.xlu0 %142, %v93
      %v144 = vpop.permute.xlu0 %143
      %147 = vset.pattern.permute.xlu0 0
      %148 = vperm.xlu0 %147, %v94
      %v149 = vpop.permute.xlu0 %148
      %152 = vset.pattern.permute.xlu0 0
      %153 = vperm.xlu0 %152, %v95
      %v154 = vpop.permute.xlu0 %153
      %157 = vset.pattern.permute.xlu0 0
      %158 = vperm.xlu0 %157, %v96
      %v159 = vpop.permute.xlu0 %158
      %162 = vset.pattern.permute.xlu0 0
      %163 = vperm.xlu0 %162, %v97
      %v164 = vpop.permute.xlu0 %163
      %167 = vset.pattern.permute.xlu0 0
      %168 = vperm.xlu0 %167, %v98
      %v169 = vpop.permute.xlu0 %168
      %172 = vset.pattern.permute.xlu0 0
      %173 = vperm.xlu0 %172, %v99
      %v174 = vpop.permute.xlu0 %173
      %177 = vset.pattern.permute.xlu0 0
      %178 = vperm.xlu0 %177, %v100
      %v179 = vpop.permute.xlu0 %178
      %182 = vset.pattern.permute.xlu0 0
      %183 = vperm.xlu0 %182, %v101
      %v184 = vpop.permute.xlu0 %183
      %187 = vset.pattern.permute.xlu0 0
      %188 = vperm.xlu0 %187, %v102
      %v189 = vpop.permute.xlu0 %188
      %192 = vset.pattern.permute.xlu0 0
      %193 = vperm.xlu0 %192, %v103
      %v194 = vpop.permute.xlu0 %193
      %197 = vset.pattern.permute.xlu0 0
      %198 = vperm.xlu0 %197, %v104
      %v199 = vpop.permute.xlu0 %198
      %202 = vset.pattern.permute.xlu0 0
      %203 = vperm.xlu0 %202, %v105
      %v204 = vpop.permute.xlu0 %203
      %207 = vset.pattern.permute.xlu0 0
      %208 = vperm.xlu0 %207, %v106
      %v209 = vpop.permute.xlu0 %208
      %212 = vset.pattern.permute.xlu0 0
      %213 = vperm.xlu0 %212, %v107
      %v214 = vpop.permute.xlu0 %213
      %217 = vset.pattern.permute.xlu0 0
      %218 = vperm.xlu0 %217, %v108
      %v219 = vpop.permute.xlu0 %218
      %222 = vset.pattern.permute.xlu0 0
      %223 = vperm.xlu0 %222, %v109
      %v224 = vpop.permute.xlu0 %223
      %227 = vset.pattern.permute.xlu0 0
      %228 = vperm.xlu0 %227, %v110
      %v229 = vpop.permute.xlu0 %228
      %232 = vset.pattern.permute.xlu0 0
      %233 = vperm.xlu0 %232, %v111
      %v234 = vpop.permute.xlu0 %233
      %237 = vset.pattern.permute.xlu0 0
      %238 = vperm.xlu0 %237, %v112
      %v239 = vpop.permute.xlu0 %238
      %242 = vset.pattern.permute.xlu0 0
      %243 = vperm.xlu0 %242, %v113
      %v244 = vpop.permute.xlu0 %243
      %247 = vset.pattern.permute.xlu0 0
      %248 = vperm.xlu0 %247, %v114
      %v249 = vpop.permute.xlu0 %248
      %252 = vset.pattern.permute.xlu0 0
      %253 = vperm.xlu0 %252, %v115
      %v254 = vpop.permute.xlu0 %253
      %257 = vset.pattern.permute.xlu0 0
      %258 = vperm.xlu0 %257, %v116
      %v259 = vpop.permute.xlu0 %258
      %262 = vset.pattern.permute.xlu0 0
      %263 = vperm.xlu0 %262, %v117
      %v264 = vpop.permute.xlu0 %263
      %267 = vset.pattern.permute.xlu0 0
      %268 = vperm.xlu0 %267, %v118
      %v269 = vpop.permute.xlu0 %268
      %272 = vset.pattern.permute.xlu0 0
      %273 = vperm.xlu0 %272, %v119
      %v274 = vpop.permute.xlu0 %273
      %277 = vset.pattern.permute.xlu0 0
      %278 = vperm.xlu0 %277, %v120
      %v279 = vpop.permute.xlu0 %278
      %v281 = vmul.f32 %v25, %v124
      %v282 = vmul.f32 %v26, %v129
      %v283 = vmul.f32 %v27, %v134
      %v284 = vmul.f32 %v28, %v139
      %v285 = vmul.f32 %v29, %v144
      %v286 = vmul.f32 %v30, %v149
      %v287 = vmul.f32 %v31, %v154
      %v288 = vmul.f32 %v32, %v159
      %v289 = vmul.f32 %v33, %v164
      %v290 = vmul.f32 %v34, %v169
      %v291 = vmul.f32 %v35, %v174
      %v292 = vmul.f32 %v36, %v179
      %v293 = vmul.f32 %v37, %v184
      %v294 = vmul.f32 %v38, %v189
      %v295 = vmul.f32 %v39, %v194
      %v296 = vmul.f32 %v40, %v199
      %v297 = vmul.f32 %v41, %v204
      %v298 = vmul.f32 %v42, %v209
      %v299 = vmul.f32 %v43, %v214
      %v300 = vmul.f32 %v44, %v219
      %v301 = vmul.f32 %v45, %v224
      %v302 = vmul.f32 %v46, %v229
      %v303 = vmul.f32 %v47, %v234
      %v304 = vmul.f32 %v48, %v239
      %v305 = vmul.f32 %v49, %v244
      %v306 = vmul.f32 %v50, %v249
      %v307 = vmul.f32 %v51, %v254
      %v308 = vmul.f32 %v52, %v259
      %v309 = vmul.f32 %v53, %v264
      %v310 = vmul.f32 %v54, %v269
      %v311 = vmul.f32 %v55, %v274
      %v312 = vmul.f32 %v56, %v279
      %v313 = vmul.f32 %v57, %v124
      %v314 = vmul.f32 %v58, %v129
      %v315 = vmul.f32 %v59, %v134
      %v316 = vmul.f32 %v60, %v139
      %v317 = vmul.f32 %v61, %v144
      %v318 = vmul.f32 %v62, %v149
      %v319 = vmul.f32 %v63, %v154
      %v320 = vmul.f32 %v64, %v159
      %v321 = vmul.f32 %v65, %v164
      %v322 = vmul.f32 %v66, %v169
      %v323 = vmul.f32 %v67, %v174
      %v324 = vmul.f32 %v68, %v179
      %v325 = vmul.f32 %v69, %v184
      %v326 = vmul.f32 %v70, %v189
      %v327 = vmul.f32 %v71, %v194
      %v328 = vmul.f32 %v72, %v199
      %v329 = vmul.f32 %v73, %v204
      %v330 = vmul.f32 %v74, %v209
      %v331 = vmul.f32 %v75, %v214
      %v332 = vmul.f32 %v76, %v219
      %v333 = vmul.f32 %v77, %v224
      %v334 = vmul.f32 %v78, %v229
      %v335 = vmul.f32 %v79, %v234
      %v336 = vmul.f32 %v80, %v239
      %v337 = vmul.f32 %v81, %v244
      %v338 = vmul.f32 %v82, %v249
      %v339 = vmul.f32 %v83, %v254
      %v340 = vmul.f32 %v84, %v259
      %v341 = vmul.f32 %v85, %v264
      %v342 = vmul.f32 %v86, %v269
      %v343 = vmul.f32 %v87, %v274
      %v344 = vmul.f32 %v88, %v279
      %vm345 = vcmask 261120
      %v346 = vsel %vm345, %v281, 0.0
      %v347 = vsel %vm345, %v282, 0.0
      %v348 = vadd.f32 %v346, %v347
      %v349 = vsel %vm345, %v283, 0.0
      %v350 = vadd.f32 %v348, %v349
      %v351 = vsel %vm345, %v284, 0.0
      %v352 = vadd.f32 %v350, %v351
      %v353 = vsel %vm345, %v285, 0.0
      %v354 = vadd.f32 %v352, %v353
      %v355 = vsel %vm345, %v286, 0.0
      %v356 = vadd.f32 %v354, %v355
      %v357 = vsel %vm345, %v287, 0.0
      %v358 = vadd.f32 %v356, %v357
      %v359 = vsel %vm345, %v288, 0.0
      %v360 = vadd.f32 %v358, %v359
      %v361 = vsel %vm345, %v289, 0.0
      %v362 = vadd.f32 %v360, %v361
      %v363 = vsel %vm345, %v290, 0.0
      %v364 = vadd.f32 %v362, %v363
      %v365 = vsel %vm345, %v291, 0.0
      %v366 = vadd.f32 %v364, %v365
      %v367 = vsel %vm345, %v292, 0.0
      %v368 = vadd.f32 %v366, %v367
      %v369 = vsel %vm345, %v293, 0.0
      %v370 = vadd.f32 %v368, %v369
      %v371 = vsel %vm345, %v294, 0.0
      %v372 = vadd.f32 %v370, %v371
      %v373 = vsel %vm345, %v295, 0.0
      %v374 = vadd.f32 %v372, %v373
      %v375 = vsel %vm345, %v296, 0.0
      %v376 = vadd.f32 %v374, %v375
      %v377 = vsel %vm345, %v297, 0.0
      %v378 = vadd.f32 %v376, %v377
      %v379 = vsel %vm345, %v298, 0.0
      %v380 = vadd.f32 %v378, %v379
      %v381 = vsel %vm345, %v299, 0.0
      %v382 = vadd.f32 %v380, %v381
      %v383 = vsel %vm345, %v300, 0.0
      %v384 = vadd.f32 %v382, %v383
      %v385 = vsel %vm345, %v301, 0.0
      %v386 = vadd.f32 %v384, %v385
      %v387 = vsel %vm345, %v302, 0.0
      %v388 = vadd.f32 %v386, %v387
      %v389 = vsel %vm345, %v303, 0.0
      %v390 = vadd.f32 %v388, %v389
      %v391 = vsel %vm345, %v304, 0.0
      %v392 = vadd.f32 %v390, %v391
      %v393 = vsel %vm345, %v305, 0.0
      %v394 = vadd.f32 %v392, %v393
      %v395 = vsel %vm345, %v306, 0.0
      %v396 = vadd.f32 %v394, %v395
      %v397 = vsel %vm345, %v307, 0.0
      %v398 = vadd.f32 %v396, %v397
      %v399 = vsel %vm345, %v308, 0.0
      %v400 = vadd.f32 %v398, %v399
      %v401 = vsel %vm345, %v309, 0.0
      %v402 = vadd.f32 %v400, %v401
      %v403 = vsel %vm345, %v310, 0.0
      %v404 = vadd.f32 %v402, %v403
      %v405 = vsel %vm345, %v311, 0.0
      %v406 = vadd.f32 %v404, %v405
      %vm407 = vcmask 257024
      %v408 = vsel %vm407, %v312, 0.0
      %v409 = vadd.f32 %v406, %v408
      %v410 = vrot.slane %v409, 4
      %v411 = vadd.f32 %v409, %v410
      %v412 = vrot.slane %v411, 2
      %v413 = vadd.f32 %v411, %v412
      %v414 = vrot.slane %v413, 1
      %v415 = vadd.f32 %v413, %v414
      %v416 = vsel %vm345, %v313, 0.0
      %v417 = vsel %vm345, %v314, 0.0
      %v418 = vadd.f32 %v416, %v417
      %v419 = vsel %vm345, %v315, 0.0
      %v420 = vadd.f32 %v418, %v419
      %v421 = vsel %vm345, %v316, 0.0
      %v422 = vadd.f32 %v420, %v421
      %v423 = vsel %vm345, %v317, 0.0
      %v424 = vadd.f32 %v422, %v423
      %v425 = vsel %vm345, %v318, 0.0
      %v426 = vadd.f32 %v424, %v425
      %v427 = vsel %vm345, %v319, 0.0
      %v428 = vadd.f32 %v426, %v427
      %v429 = vsel %vm345, %v320, 0.0
      %v430 = vadd.f32 %v428, %v429
      %v431 = vsel %vm345, %v321, 0.0
      %v432 = vadd.f32 %v430, %v431
      %v433 = vsel %vm345, %v322, 0.0
      %v434 = vadd.f32 %v432, %v433
      %v435 = vsel %vm345, %v323, 0.0
      %v436 = vadd.f32 %v434, %v435
      %v437 = vsel %vm345, %v324, 0.0
      %v438 = vadd.f32 %v436, %v437
      %v439 = vsel %vm345, %v325, 0.0
      %v440 = vadd.f32 %v438, %v439
      %v441 = vsel %vm345, %v326, 0.0
      %v442 = vadd.f32 %v440, %v441
      %v443 = vsel %vm345, %v327, 0.0
      %v444 = vadd.f32 %v442, %v443
      %v445 = vsel %vm345, %v328, 0.0
      %v446 = vadd.f32 %v444, %v445
      %v447 = vsel %vm345, %v329, 0.0
      %v448 = vadd.f32 %v446, %v447
      %v449 = vsel %vm345, %v330, 0.0
      %v450 = vadd.f32 %v448, %v449
      %v451 = vsel %vm345, %v331, 0.0
      %v452 = vadd.f32 %v450, %v451
      %v453 = vsel %vm345, %v332, 0.0
      %v454 = vadd.f32 %v452, %v453
      %v455 = vsel %vm345, %v333, 0.0
      %v456 = vadd.f32 %v454, %v455
      %v457 = vsel %vm345, %v334, 0.0
      %v458 = vadd.f32 %v456, %v457
      %v459 = vsel %vm345, %v335, 0.0
      %v460 = vadd.f32 %v458, %v459
      %v461 = vsel %vm345, %v336, 0.0
      %v462 = vadd.f32 %v460, %v461
      %v463 = vsel %vm345, %v337, 0.0
      %v464 = vadd.f32 %v462, %v463
      %v465 = vsel %vm345, %v338, 0.0
      %v466 = vadd.f32 %v464, %v465
      %v467 = vsel %vm345, %v339, 0.0
      %v468 = vadd.f32 %v466, %v467
      %v469 = vsel %vm345, %v340, 0.0
      %v470 = vadd.f32 %v468, %v469
      %v471 = vsel %vm345, %v341, 0.0
      %v472 = vadd.f32 %v470, %v471
      %v473 = vsel %vm345, %v342, 0.0
      %v474 = vadd.f32 %v472, %v473
      %v475 = vsel %vm345, %v343, 0.0
      %v476 = vadd.f32 %v474, %v475
      %v477 = vsel %vm407, %v344, 0.0
      %v478 = vadd.f32 %v476, %v477
      %v479 = vrot.slane %v478, 4
      %v480 = vadd.f32 %v478, %v479
      %v481 = vrot.slane %v480, 2
      %v482 = vadd.f32 %v480, %v481
      %v483 = vrot.slane %v482, 1
      %v484 = vadd.f32 %v482, %v483
      %vm487 = vcmask 1041409
      %v488 = vsel %vm487, %v484, %v415
      %vm490 = vcmask 254976
      %491 = vst.msk [vmem:[#allocation2] sm:$0x3] %vm490, %v488
      %vm492 = vcmask 1024
      %493 = vst.msk [vmem:[#allocation3] sm:$0x3] %vm492, -1e+30
      %494 = vst.msk [vmem:[#allocation4] sm:$0x3] %vm492, 0.0
    $region21: #{tpu_custom_call.1} parent=1 // pred_fallthru
      _
    %v495 = vld [vmem:[#allocation2] sm:$0x3]
    %v496 = vpack.c.bf16 %v495, %v495
    %v497 = vld [vmem:[%s2] sm:$0xf]
    %v498 = vld [vmem:[%s2 + $0x4] sm:$0xf]
    %v499 = vld [vmem:[%s2 + $0x8] sm:$0xf]
    %v500 = vld [vmem:[%s2 + $0xc] sm:$0xf]
    %v501 = vld [vmem:[%s2 + $0x10] sm:$0xf]
    %v502 = vld [vmem:[%s2 + $0x14] sm:$0xf]
    %v503 = vld [vmem:[%s2 + $0x18] sm:$0xf]
    %v504 = vld [vmem:[%s2 + $0x1c] sm:$0xf]
    %v505 = vld [vmem:[%s2 + $0x20] sm:$0xf]
    %v506 = vld [vmem:[%s2 + $0x24] sm:$0xf]
    %v507 = vld [vmem:[%s2 + $0x28] sm:$0xf]
    %v508 = vld [vmem:[%s2 + $0x2c] sm:$0xf]
    %v509 = vld [vmem:[%s2 + $0x30] sm:$0xf]
    %v510 = vld [vmem:[%s2 + $0x34] sm:$0xf]
    %v511 = vld [vmem:[%s2 + $0x38] sm:$0xf]
    %v512 = vld [vmem:[%s2 + $0x3c] sm:$0xf]
    %v513 = vld [vmem:[%s3] sm:$0x1]
    %v515 = vlaneseq
    %v516 = vshrl.u32 %v515, 7
    %v517 = vsub.s32 0, %v516
    %v518 = vrot.slane %v513, %v517
    %v536 = vunpack.c.l.b16 %v497
    %v537 = vunpack.c.l.b16 %v498
    %v538 = vunpack.c.l.b16 %v499
    %v539 = vunpack.c.l.b16 %v500
    %v540 = vunpack.c.l.b16 %v501
    %v541 = vunpack.c.l.b16 %v502
    %v542 = vunpack.c.l.b16 %v503
    %v543 = vunpack.c.l.b16 %v504
    %v544 = vunpack.c.l.b16 %v505
    %v545 = vunpack.c.l.b16 %v506
    %v546 = vunpack.c.l.b16 %v507
    %v547 = vunpack.c.l.b16 %v508
    %v548 = vunpack.c.l.b16 %v509
    %v549 = vunpack.c.l.b16 %v510
    %v550 = vunpack.c.l.b16 %v511
    %v551 = vunpack.c.l.b16 %v512
    %v552 = vpack.c.b16 %v537, %v536
    %v553 = vpack.c.b16 %v539, %v538
    %v554 = vpack.c.b16 %v541, %v540
    %v555 = vpack.c.b16 %v543, %v542
    %v556 = vpack.c.b16 %v545, %v544
    %v557 = vpack.c.b16 %v547, %v546
    %v558 = vpack.c.b16 %v549, %v548
    %v559 = vpack.c.b16 %v551, %v550
    %vm560 = vcmask 261120
    %v562 = vsel %vm560, %v496, 0
    %v565 = vsel %vm560, %v552, 0
    %v568 = vsel %vm560, %v553, 0
    %v571 = vsel %vm560, %v554, 0
    %v574 = vsel %vm560, %v555, 0
    %v577 = vsel %vm560, %v556, 0
    %v580 = vsel %vm560, %v557, 0
    %v583 = vsel %vm560, %v558, 0
    %v586 = vsel %vm560, %v559, 0
    %588 = vmatprep.subr.bf16.mxu0 0
    %589 = vmatpush1.bf16.xpose.msra.mxu0 %v565
    %590 = vmatprep.subr.bf16.mxu0 0
    %591 = vmatpush1.bf16.xpose.msra.mxu0 %v568
    %592 = vmatprep.subr.bf16.mxu0 0
    %593 = vmatpush1.bf16.xpose.msra.mxu0 %v571
    %594 = vmatprep.subr.bf16.mxu0 0
    %595 = vmatpush1.bf16.xpose.msra.mxu0 %v574
    %596 = vmatprep.subr.bf16.mxu0 0
    %597 = vmatpush1.bf16.xpose.msra.mxu0 %v577
    %598 = vmatprep.subr.bf16.mxu0 0
    %599 = vmatpush1.bf16.xpose.msra.mxu0 %v580
    %600 = vmatprep.subr.bf16.mxu0 0
    %601 = vmatpush1.bf16.xpose.msra.mxu0 %v583
    %602 = vmatprep.subr.bf16.mxu0 0
    %603 = vmatpush1.bf16.xpose.msra.mxu0 %v586
    %604 = vmatprep.subr.bf16.mxu0 0
    %605 = vmatpush1.bf16.xpose.msra.mxu0 0
    %606 = vmatprep.subr.bf16.mxu0 0
    %607 = vmatpush1.bf16.xpose.msra.mxu0 0
    %608 = vmatprep.subr.bf16.mxu0 0
    %609 = vmatpush1.bf16.xpose.msra.mxu0 0
    %610 = vmatprep.subr.bf16.mxu0 0
    %611 = vmatpush1.bf16.xpose.msra.mxu0 0
    %612 = vmatprep.subr.bf16.mxu0 0
    %613 = vmatpush1.bf16.xpose.msra.mxu0 0
    %614 = vmatprep.subr.bf16.mxu0 0
    %615 = vmatpush1.bf16.xpose.msra.mxu0 0
    %616 = vmatprep.subr.bf16.mxu0 0
    %617 = vmatpush1.bf16.xpose.msra.mxu0 0
    %618 = vmatprep.subr.bf16.mxu0 0
    %619 = vmatpush1.bf16.xpose.msra.mxu0 0
    %620 = vmatprep.mubr.bf16.mxu0 0
    %621 = vmatmul.mubr.bf16.gmra.mrb[0].mxu0 %v562
    %v622 = vpop.f32.mrb[0].mxu0
    %v623 = vadd.f32 %v518, %v622
    %v624 = vpop.f32.mrb[0].mxu0
    %v625 = vpop.f32.mrb[0].mxu0
    %v626 = vpop.f32.mrb[0].mxu0
    %627 = vdwg.mxu0
    %628 = vst [vmem:[#allocation5] sm:$0x3] %v623
    %v629 = vld [vmem:[#allocation3] sm:$0x3]
    %vm630 = vcmask 1041408
    %v631 = vsel %vm630, %v623, -inf
    %632 = vmax.xlane.f32.xlu0 %v631
    %v633 = vpop.xlane.xlu0 %632
    %v634 = vmax.f32 %v629, %v633
    %v635 = vsub.f32 %v629, %v634
    %v636 = vmul.f32 %v635, 1.442695
    %v637 = vpow.pop %v636
    %v638 = vld [vmem:[#allocation4] sm:$0x3]
    %v639 = vmul.f32 %v637, %v638
    %641 = vset.pattern.permute.xlu0 0
    %642 = vperm.xlu0 %641, %v634
    %v643 = vpop.permute.xlu0 %642
    %v645 = vsub.f32 %v623, %v643
    %v646 = vmul.f32 %v645, 1.442695
    %v647 = vpow.pop %v646
    %v648 = vsel %vm630, %v647, 0.0
    %649 = vadd.xlane.f32.xlu0 %v648
    %v650 = vpop.xlane.xlu0 %649
    %v651 = vadd.f32 %v639, %v650
    %vm652 = vcmask 1024
    %653 = vst.msk [vmem:[#allocation4] sm:$0x3] %vm652, %v651
    %654 = vst.msk [vmem:[#allocation3] sm:$0x3] %vm652, %v634
    // Predicated region
    $region22: #{tpu_custom_call.1} parent=1 // pred_check
      %p655 = pneg %p21
    $region23: #{tpu_custom_call.1} parent=1 // pred_check_branch
      %657 = sbr.rel (%p655) target = $region25
    $region24: #{tpu_custom_call.1} parent=1 // pred_region
      %v658 = vld [vmem:[#allocation3] sm:$0x3]
      %v659 = vld [vmem:[#allocation4] sm:$0x3]
      %v660 = vlog2.pop %v659
      %v661 = vmul.f32 %v660, 0.6931472
      %v662 = vadd.f32 %v658, %v661
      %663 = vst.msk [vmem:[%s5] sm:$0x3] %vm652, %v662
    $region25: #{tpu_custom_call.1} parent=1 // pred_fallthru
      _
    // Predicated region
    $region26: #{tpu_custom_call.1} parent=1 // pred_check
      _
    $region27: #{tpu_custom_call.1} parent=1 // pred_check_branch
      %665 = sbr.rel (0) target = $region29
    $region28: #{tpu_custom_call.1} parent=1 // pred_region
      %s667 = ssub.s32 32, 32
      %668 = vsyncadd [#allocation6], %s667
      %s670 = sshll.u32 [#allocation5], 4
      %s671 = int_to_ptr.vmem [resolvable:$true] %s670
      %673 = dma.vmem_to_hbm [thread:$0]  %s671, 32, %s4, [#allocation6]
    $region29: #{tpu_custom_call.1} parent=1 // pred_fallthru
      _
    // Predicated region
    $region30: #{tpu_custom_call.1} parent=1 // pred_check
      _
    $region31: #{tpu_custom_call.1} parent=1 // pred_check_branch
      %675 = sbr.rel (0) target = $region33
    $region32: #{tpu_custom_call.1} parent=1 // pred_region
      _
    $region33: #{tpu_custom_call.1} parent=1 // pred_fallthru
      _
    // Predicated region
    $region34: #{tpu_custom_call.1} parent=1 // pred_check
      _
    $region35: #{tpu_custom_call.1} parent=1 // pred_check_branch
      %677 = sbr.rel (0) target = $region37
    $region36: #{tpu_custom_call.1} parent=1 // pred_region
      %678 = dma.done [#allocation6], 32
    $region37: #{tpu_custom_call.1} parent=1 // pred_fallthru
      _
    // Predicated region
    $region38: #{tpu_custom_call.1} parent=1 // pred_check
      _
    $region39: #{tpu_custom_call.1} parent=1 // pred_check_branch
      %680 = sbr.rel (0) target = $region41
    $region40: #{tpu_custom_call.1} parent=1 // pred_region
      _
    $region41: #{tpu_custom_call.1} parent=1 // pred_fallthru
      _
    %681 = vsyncpa [#allocation6], 1

</llo_original>
